<compile_context>
chip_gen: v7x
topology: tpu7x:2x2x1
jax: 0.10.0
libtpu: 0.0.40
codegen_flags: <defaults>
</compile_context>

<pallas_src>
import math
import functools

import jax
import jax.numpy as jnp
from jax.experimental import pallas as pl
from jax.experimental.pallas import tpu as pltpu


def _round_up(a, b):
    return (a + b - 1) // b * b


def _choose_tiles(R, S):
    """Pick (tile_r, tile_s, chunk) for the stats kernel."""
    # Rows per block: multiple of 8, capped at 32; keep >=2 row blocks when
    # possible so the 'parallel' row axis can be split across TensorCores (v7x).
    tile_r = min(32, _round_up(R, 8))
    if R > 8:
        tile_r = min(tile_r, _round_up(-(-R // 2), 8))
    # Spatial lanes per block: multiple of 128, ~1 MiB f32 per input tile,
    # capped so the in-kernel chunk loop stays short.
    target_bytes = 1 << 20
    max_s = max(128, (target_bytes // (4 * tile_r)) // 128 * 128)
    tile_s = min(_round_up(S, 128), max_s, 16384)
    # Compute-chunk width (bounds vreg pressure); must divide tile_s.
    if tile_s % 512 == 0:
        chunk = 512
    elif tile_s % 256 == 0:
        chunk = 256
    else:
        chunk = 128
    return tile_r, tile_s, chunk


def _stats_kernel(x_ref, t_ref, out_ref, *, s_valid, tile_s, chunk):
    """Accumulate lane-wise per-row partial sums into the resident output block.

    out_ref: (4, tile_r, 128) f32, resident across the spatial grid axis.
      [0] sum(p*t)  [1] sum(p)  [2] sum(t)  [3] sum(bce)   (128 lane-partials)
    """
    j = pl.program_id(1)
    n_j = pl.num_programs(1)

    @pl.when(j == 0)
    def _():
        out_ref[...] = jnp.zeros_like(out_ref)

    n_chunks = tile_s // chunk
    n_groups = chunk // 128

    def fold128(v):
        # Fold (tile_r, chunk) -> (tile_r, 128) with pure VPU adds; slices are
        # at 128-lane vreg boundaries, so no cross-lane (XLU) work per step.
        r = v[:, 0:128]
        for g in range(1, n_groups):
            r = r + v[:, g * 128:(g + 1) * 128]
        return r

    def accumulate(masked):
        # Chunked pass over the resident VMEM block: big DMA block, small
        # compute working set.
        for k in range(n_chunks):
            lo, hi = k * chunk, (k + 1) * chunk
            x = x_ref[:, lo:hi].astype(jnp.float32)
            t = t_ref[:, lo:hi].astype(jnp.float32)

            # One shared exp for sigmoid and BCE (EUP: 1 exp + 1 log / element).
            e = jnp.exp(-jnp.abs(x))
            inv = 1.0 / (1.0 + e)
            p = jnp.where(x >= 0.0, inv, e * inv)           # stable sigmoid(x)
            # BCEWithLogits (stable): max(x,0) - x*t + log1p(exp(-|x|))
            bce = jnp.maximum(x, 0.0) - x * t + jnp.log1p(e)

            if masked:
                # Only the boundary spatial tile can read past S; those lanes
                # hold unspecified data, so *select* (NaN/Inf-safe), don't multiply.
                col = (jax.lax.broadcasted_iota(jnp.int32, x.shape, 1)
                       + j * tile_s + lo)
                valid = col < s_valid
                zero = jnp.zeros_like(x)
                p = jnp.where(valid, p, zero)
                t = jnp.where(valid, t, zero)
                bce = jnp.where(valid, bce, zero)

            out_ref[0] += fold128(p * t)
            out_ref[1] += fold128(p)
            out_ref[2] += fold128(t)
            out_ref[3] += fold128(bce)

    if s_valid % tile_s == 0:
        accumulate(False)              # no tile ever crosses the S boundary
    else:
        @pl.when(j < n_j - 1)
        def _():
            accumulate(False)          # interior tiles: unmasked fast path

        @pl.when(j == n_j - 1)
        def _():
            accumulate(True)           # boundary tile: masked


def dice_ce_loss(x, target, *, dice_weight=0.5, ce_weight=0.5,
                 include_background=False, eps=1e-8):
    """DiceCELoss forward (reduction='mean', mask=None path)."""
    # TODO(synk): optional `mask` argument of the PyTorch module not implemented
    # (mask=None path only).
    B, C = x.shape[0], x.shape[1]
    S = math.prod(x.shape[2:])
    R = B * C

    # Free reshapes (contiguous); dtype cast happens inside the kernel, so no
    # extra full-size HBM copies are created here.  (If the target is known to
    # be binary, the caller can pass it as bf16 to halve its HBM traffic.)
    x2 = x.reshape(R, S)
    t2 = target.reshape(R, S)

    tile_r, tile_s, chunk = _choose_tiles(R, S)
    n_row_blocks = pl.cdiv(R, tile_r)
    grid = (n_row_blocks, pl.cdiv(S, tile_s))
    r_pad = n_row_blocks * tile_r

    out = pl.pallas_call(
        functools.partial(_stats_kernel, s_valid=S, tile_s=tile_s, chunk=chunk),
        out_shape=jax.ShapeDtypeStruct((4, r_pad, 128), jnp.float32),
        grid_spec=pltpu.PrefetchScalarGridSpec(
            num_scalar_prefetch=0,
            grid=grid,
            in_specs=[
                pl.BlockSpec((tile_r, tile_s), lambda i, j: (i, j)),
                pl.BlockSpec((tile_r, tile_s), lambda i, j: (i, j)),
            ],
            out_specs=pl.BlockSpec((4, tile_r, 128), lambda i, j: (0, i, 0)),
        ),
        compiler_params=pltpu.CompilerParams(
            dimension_semantics=("parallel", "arbitrary"),
            vmem_limit_bytes=32 * 1024 * 1024),
    )(x2, t2)

    # Tiny epilogue in plain JAX: fold the 128 lane-partials, drop padded rows.
    stats = jnp.sum(out, axis=-1)[:, :R].reshape(4, B, C)
    sum_pt, sum_p, sum_t, sum_bce = stats[0], stats[1], stats[2], stats[3]

    # BCEWithLogitsMaskLoss: mean over spatial per (b,c), then mean over (b,c).
    ce_loss = jnp.mean(sum_bce) / S

    # DiceLoss: soft dice on sigmoid probs, per (b,c'), background excluded.
    if (not include_background) and C > 1:
        sum_pt = sum_pt[:, 1:]
        sum_p = sum_p[:, 1:]
        sum_t = sum_t[:, 1:]
    dice = (2.0 * sum_pt + eps) / (sum_p + sum_t + eps)
    dice_loss = jnp.mean(1.0 - dice)

    return dice_weight * dice_loss + ce_weight * ce_loss


def _reference_loss(x, target, *, dice_weight=0.5, ce_weight=0.5,
                    include_background=False, eps=1e-8):
    """Pure-JAX reference mirroring the PyTorch module (mask=None)."""
    x = x.astype(jnp.float32)
    t = target.astype(jnp.float32)
    reduce_axes = tuple(range(2, x.ndim))

    bce = jnp.maximum(x, 0.0) - x * t + jnp.log1p(jnp.exp(-jnp.abs(x)))
    ce_loss = jnp.mean(jnp.mean(bce, axis=reduce_axes))

    p = jax.nn.sigmoid(x)
    if not include_background:
        p, tt = p[:, 1:], t[:, 1:]
    else:
        tt = t
    inter = jnp.sum(p * tt, axis=reduce_axes)
    denom = jnp.sum(p, axis=reduce_axes) + jnp.sum(tt, axis=reduce_axes)
    dice = (2.0 * inter + eps) / (denom + eps)
    dice_loss = jnp.mean(1.0 - dice)
    return dice_weight * dice_loss + ce_weight * ce_loss


if __name__ == "__main__":
    key = jax.random.PRNGKey(0)
    kx, kt = jax.random.split(key)

    B, C, H, W = 2, 4, 16, 16
    x = jax.random.normal(kx, (B, C, H, W), dtype=jnp.float32)
    target = (jax.random.uniform(kt, (B, C, H, W)) > 0.5).astype(jnp.float32)

    out = dice_ce_loss(x, target)
    out = jax.block_until_ready(out)

    ref = _reference_loss(x, target)
    assert jnp.allclose(out, ref, rtol=1e-5, atol=1e-6), (out, ref)

    print("KERNEL_OK")
</pallas_src>

<mosaic_0001>
module attributes {stable_mosaic.version = 11 : i64} {
  func.func @_stats_kernel(%arg0: i32, %arg1: i32, %arg2: memref<8x256xf32, #tpu.memory_space<vmem>>, %arg3: memref<8x256xf32, #tpu.memory_space<vmem>>, %arg4: memref<4x8x128xf32, #tpu.memory_space<vmem>>) attributes {dimension_semantics = [#tpu.dimension_semantics<parallel>, #tpu.dimension_semantics<arbitrary>], iteration_bounds = array<i64: 1, 1>, scalar_prefetch = 0 : i64, scratch_operands = 0 : i64, tpu.core_type = #tpu.core_type<tc>, window_params = [{transform_indices = @transform_0, window_bounds = array<i64: 8, 256>}, {transform_indices = @transform_1, window_bounds = array<i64: 8, 256>}, {transform_indices = @transform_2, window_bounds = array<i64: 4, 8, 128>}]} {
    %c0_i32 = arith.constant 0 : i32
    %0 = arith.cmpi eq, %arg1, %c0_i32 : i32
    %1 = arith.extui %0 : i1 to i32
    %c0_i32_0 = arith.constant 0 : i32
    %2 = arith.cmpi ne, %1, %c0_i32_0 : i32
    scf.if %2 {
      %cst_29 = arith.constant 0.000000e+00 : f32
      %60 = vector.broadcast %cst_29 : f32 to vector<4x8x128xf32>
      %c0_30 = arith.constant 0 : index
      %c0_31 = arith.constant 0 : index
      %c0_32 = arith.constant 0 : index
      %61 = vector.load %arg4[%c0_30, %c0_31, %c0_32] : memref<4x8x128xf32, #tpu.memory_space<vmem>>, vector<4x8x128xf32>
      tpu.vector_store %arg4[%c0_30, %c0_31, %c0_32], %60 {strides = array<i32>} : memref<4x8x128xf32, #tpu.memory_space<vmem>>, vector<4x8x128xf32>,
    } else {
    }
    %c0 = arith.constant 0 : index
    %c0_1 = arith.constant 0 : index
    %3 = vector.load %arg2[%c0, %c0_1] : memref<8x256xf32, #tpu.memory_space<vmem>>, vector<8x256xf32>
    %c0_2 = arith.constant 0 : index
    %c0_3 = arith.constant 0 : index
    %4 = vector.load %arg3[%c0_2, %c0_3] : memref<8x256xf32, #tpu.memory_space<vmem>>, vector<8x256xf32>
    %5 = math.absf %3 : vector<8x256xf32>
    %cst = arith.constant 0.000000e+00 : f32
    %6 = vector.broadcast %cst : f32 to vector<8x256xf32>
    %7 = arith.subf %6, %5 : vector<8x256xf32>
    %8 = math.exp %7 : vector<8x256xf32>
    %cst_4 = arith.constant 1.000000e+00 : f32
    %9 = vector.broadcast %cst_4 : f32 to vector<8x256xf32>
    %10 = arith.addf %9, %8 : vector<8x256xf32>
    %cst_5 = arith.constant 1.000000e+00 : f32
    %11 = vector.broadcast %cst_5 : f32 to vector<8x256xf32>
    %12 = arith.divf %11, %10 : vector<8x256xf32>
    %cst_6 = arith.constant 0.000000e+00 : f32
    %13 = vector.broadcast %cst_6 : f32 to vector<8x256xf32>
    %14 = arith.cmpf oge, %3, %13 : vector<8x256xf32>
    %15 = arith.mulf %8, %12 : vector<8x256xf32>
    %16 = arith.select %14, %12, %15 : vector<8x256xi1>, vector<8x256xf32>
    %cst_7 = arith.constant 0.000000e+00 : f32
    %17 = vector.broadcast %cst_7 : f32 to vector<8x256xf32>
    %18 = arith.maximumf %3, %17 : vector<8x256xf32>
    %19 = arith.mulf %3, %4 : vector<8x256xf32>
    %20 = arith.subf %18, %19 : vector<8x256xf32>
    %21 = math.log1p %8 : vector<8x256xf32>
    %22 = arith.addf %20, %21 : vector<8x256xf32>
    %c0_8 = arith.constant 0 : index
    %c0_9 = arith.constant 0 : index
    %c0_10 = arith.constant 0 : index
    %23 = vector.load %arg4[%c0_8, %c0_9, %c0_10] : memref<4x8x128xf32, #tpu.memory_space<vmem>>, vector<1x8x128xf32>
    %24 = vector.shape_cast %23 : vector<1x8x128xf32> to vector<8x128xf32>
    %25 = arith.mulf %16, %4 : vector<8x256xf32>
    %26 = vector.extract_strided_slice %25 {offsets = [0, 0], sizes = [8, 128], strides = [1, 1]} : vector<8x256xf32> to vector<8x128xf32>
    %27 = vector.extract_strided_slice %25 {offsets = [0, 128], sizes = [8, 128], strides = [1, 1]} : vector<8x256xf32> to vector<8x128xf32>
    %28 = arith.addf %26, %27 : vector<8x128xf32>
    %29 = arith.addf %24, %28 : vector<8x128xf32>
    %c0_11 = arith.constant 0 : index
    %c0_12 = arith.constant 0 : index
    %c0_13 = arith.constant 0 : index
    %30 = vector.load %arg4[%c0_11, %c0_12, %c0_13] : memref<4x8x128xf32, #tpu.memory_space<vmem>>, vector<1x8x128xf32>
    %31 = vector.shape_cast %30 : vector<1x8x128xf32> to vector<8x128xf32>
    %32 = vector.shape_cast %29 : vector<8x128xf32> to vector<1x8x128xf32>
    tpu.vector_store %arg4[%c0_11, %c0_12, %c0_13], %32 {strides = array<i32>} : memref<4x8x128xf32, #tpu.memory_space<vmem>>, vector<1x8x128xf32>,
    %c1 = arith.constant 1 : index
    %c0_14 = arith.constant 0 : index
    %c0_15 = arith.constant 0 : index
    %33 = vector.load %arg4[%c1, %c0_14, %c0_15] : memref<4x8x128xf32, #tpu.memory_space<vmem>>, vector<1x8x128xf32>
    %34 = vector.shape_cast %33 : vector<1x8x128xf32> to vector<8x128xf32>
    %35 = vector.extract_strided_slice %16 {offsets = [0, 0], sizes = [8, 128], strides = [1, 1]} : vector<8x256xf32> to vector<8x128xf32>
    %36 = vector.extract_strided_slice %16 {offsets = [0, 128], sizes = [8, 128], strides = [1, 1]} : vector<8x256xf32> to vector<8x128xf32>
    %37 = arith.addf %35, %36 : vector<8x128xf32>
    %38 = arith.addf %34, %37 : vector<8x128xf32>
    %c1_16 = arith.constant 1 : index
    %c0_17 = arith.constant 0 : index
    %c0_18 = arith.constant 0 : index
    %39 = vector.load %arg4[%c1_16, %c0_17, %c0_18] : memref<4x8x128xf32, #tpu.memory_space<vmem>>, vector<1x8x128xf32>
    %40 = vector.shape_cast %39 : vector<1x8x128xf32> to vector<8x128xf32>
    %41 = vector.shape_cast %38 : vector<8x128xf32> to vector<1x8x128xf32>
    tpu.vector_store %arg4[%c1_16, %c0_17, %c0_18], %41 {strides = array<i32>} : memref<4x8x128xf32, #tpu.memory_space<vmem>>, vector<1x8x128xf32>,
    %c2 = arith.constant 2 : index
    %c0_19 = arith.constant 0 : index
    %c0_20 = arith.constant 0 : index
    %42 = vector.load %arg4[%c2, %c0_19, %c0_20] : memref<4x8x128xf32, #tpu.memory_space<vmem>>, vector<1x8x128xf32>
    %43 = vector.shape_cast %42 : vector<1x8x128xf32> to vector<8x128xf32>
    %44 = vector.extract_strided_slice %4 {offsets = [0, 0], sizes = [8, 128], strides = [1, 1]} : vector<8x256xf32> to vector<8x128xf32>
    %45 = vector.extract_strided_slice %4 {offsets = [0, 128], sizes = [8, 128], strides = [1, 1]} : vector<8x256xf32> to vector<8x128xf32>
    %46 = arith.addf %44, %45 : vector<8x128xf32>
    %47 = arith.addf %43, %46 : vector<8x128xf32>
    %c2_21 = arith.constant 2 : index
    %c0_22 = arith.constant 0 : index
    %c0_23 = arith.constant 0 : index
    %48 = vector.load %arg4[%c2_21, %c0_22, %c0_23] : memref<4x8x128xf32, #tpu.memory_space<vmem>>, vector<1x8x128xf32>
    %49 = vector.shape_cast %48 : vector<1x8x128xf32> to vector<8x128xf32>
    %50 = vector.shape_cast %47 : vector<8x128xf32> to vector<1x8x128xf32>
    tpu.vector_store %arg4[%c2_21, %c0_22, %c0_23], %50 {strides = array<i32>} : memref<4x8x128xf32, #tpu.memory_space<vmem>>, vector<1x8x128xf32>,
    %c3 = arith.constant 3 : index
    %c0_24 = arith.constant 0 : index
    %c0_25 = arith.constant 0 : index
    %51 = vector.load %arg4[%c3, %c0_24, %c0_25] : memref<4x8x128xf32, #tpu.memory_space<vmem>>, vector<1x8x128xf32>
    %52 = vector.shape_cast %51 : vector<1x8x128xf32> to vector<8x128xf32>
    %53 = vector.extract_strided_slice %22 {offsets = [0, 0], sizes = [8, 128], strides = [1, 1]} : vector<8x256xf32> to vector<8x128xf32>
    %54 = vector.extract_strided_slice %22 {offsets = [0, 128], sizes = [8, 128], strides = [1, 1]} : vector<8x256xf32> to vector<8x128xf32>
    %55 = arith.addf %53, %54 : vector<8x128xf32>
    %56 = arith.addf %52, %55 : vector<8x128xf32>
    %c3_26 = arith.constant 3 : index
    %c0_27 = arith.constant 0 : index
    %c0_28 = arith.constant 0 : index
    %57 = vector.load %arg4[%c3_26, %c0_27, %c0_28] : memref<4x8x128xf32, #tpu.memory_space<vmem>>, vector<1x8x128xf32>
    %58 = vector.shape_cast %57 : vector<1x8x128xf32> to vector<8x128xf32>
    %59 = vector.shape_cast %56 : vector<8x128xf32> to vector<1x8x128xf32>
    tpu.vector_store %arg4[%c3_26, %c0_27, %c0_28], %59 {strides = array<i32>} : memref<4x8x128xf32, #tpu.memory_space<vmem>>, vector<1x8x128xf32>,
    return
  }
  func.func @transform_0(%arg0: i32, %arg1: i32) -> (i32, i32) {
    %c0_i32 = arith.constant 0 : i32
    return %arg0, %arg1 : i32, i32
  }
  func.func @transform_1(%arg0: i32, %arg1: i32) -> (i32, i32) {
    %c0_i32 = arith.constant 0 : i32
    return %arg0, %arg1 : i32, i32
  }
  func.func @transform_2(%arg0: i32, %arg1: i32) -> (i32, i32, i32) {
    %c0_i32 = arith.constant 0 : i32
    %c0_i32_0 = arith.constant 0 : i32
    %c0_i32_1 = arith.constant 0 : i32
    return %c0_i32, %arg0, %c0_i32_0 : i32, i32, i32
  }
}

</mosaic_0001>

<llo_original>
// kernel: tpu_custom_call.1
$region0: #{tpu_custom_call.1}
  #allocation0 [shape = 'u32[]', space=smem, size = 0x4, offset = 0x4, fixed_abs, tag = 'smem constant byte address 0x4 - core index']
  #allocation1 [shape = 'u32[144,128]{1,0:T(1,128)}', space=vmem, size = 0x12000, scoped, tag = 'internal scratch']
  %s0 = inlined_call_operand.hbm [shape: f32[8,256], index: 0, kind: input, shape index: {}]
  %s1 = inlined_call_operand.hbm [shape: f32[8,256], index: 1, kind: input, shape index: {}]
  %s2 = inlined_call_operand.hbm [shape: f32[4,8,128], index: 2, kind: output, shape index: {}]
  %s3 = sld [smem:[#allocation0]]
  $region30: #{tpu_custom_call.1} parent=0
    _
  %s5 = ssub.s32 1, %s3
  %s6 = scalar_select 0, %s5, %s3
  $region1: #{tpu_custom_call.1} parent=0
    #allocation2 [shape = 'u8[8192]{0}', space=vmem, size = 0x2000, scoped, tag = 'input window, operand 0, single buffered']
    #allocation3 [shape = 's32[1]{0}', space=sflag, size = 0x4, scoped, tag = 'scoped memory for tpu_custom_call.1']
    #allocation4 [shape = 's32[1]{0}', space=sflag, size = 0x4, scoped, tag = 'scoped memory for tpu_custom_call.1']
    #allocation5 [shape = 'u8[8192]{0}', space=vmem, size = 0x2000, scoped, tag = 'input window, operand 1, single buffered']
    #allocation6 [shape = 's32[1]{0}', space=sflag, size = 0x4, scoped, tag = 'scoped memory for tpu_custom_call.1']
    #allocation7 [shape = 'u8[16384]{0}', space=vmem, size = 0x4000, scoped, tag = 'output window, operand 0, single buffered']
    %7 = vsyncpa [#allocation3], 0
    %8 = vsyncpa [#allocation6], 0
    %9 = vsyncpa [#allocation4], 0
    // Predicated region
    $region2: #{tpu_custom_call.1} parent=1 // pred_check
      _
    $region3: #{tpu_custom_call.1} parent=1 // pred_check_branch
      %11 = sbr.rel (0) target = $region5
    $region4: #{tpu_custom_call.1} parent=1 // pred_region
      %s13 = ssub.s32 256, 256
      %14 = vsyncadd [#allocation3], %s13
      %s16 = sshll.u32 [#allocation2], 4
      %s17 = int_to_ptr.vmem [resolvable:$true] %s16
      %19 = dma.hbm_to_vmem [thread:$0]  %s0, 256, %s17, [#allocation3]
    $region5: #{tpu_custom_call.1} parent=1 // pred_fallthru
      _
    // Predicated region
    $region6: #{tpu_custom_call.1} parent=1 // pred_check
      _
    $region7: #{tpu_custom_call.1} parent=1 // pred_check_branch
      %21 = sbr.rel (0) target = $region9
    $region8: #{tpu_custom_call.1} parent=1 // pred_region
      %s23 = ssub.s32 256, 256
      %24 = vsyncadd [#allocation6], %s23
      %s26 = sshll.u32 [#allocation5], 4
      %s27 = int_to_ptr.vmem [resolvable:$true] %s26
      %29 = dma.hbm_to_vmem [thread:$0]  %s1, 256, %s27, [#allocation6]
    $region9: #{tpu_custom_call.1} parent=1 // pred_fallthru
      _
    // Predicated region
    $region10: #{tpu_custom_call.1} parent=1 // pred_check
      _
    $region11: #{tpu_custom_call.1} parent=1 // pred_check_branch
      %31 = sbr.rel (0) target = $region13
    $region12: #{tpu_custom_call.1} parent=1 // pred_region
      %32 = dma.done [#allocation3], 256
    $region13: #{tpu_custom_call.1} parent=1 // pred_fallthru
      _
    // Predicated region
    $region14: #{tpu_custom_call.1} parent=1 // pred_check
      _
    $region15: #{tpu_custom_call.1} parent=1 // pred_check_branch
      %34 = sbr.rel (0) target = $region17
    $region16: #{tpu_custom_call.1} parent=1 // pred_region
      %35 = dma.done [#allocation6], 256
    $region17: #{tpu_custom_call.1} parent=1 // pred_fallthru
      _
    %p36 = scmp.eq.s32.totalorder 0, 0
    // Predicated region
    $region18: #{tpu_custom_call.1} parent=1 // pred_check
      %p37 = pneg %p36
    $region19: #{tpu_custom_call.1} parent=1 // pred_check_branch
      %39 = sbr.rel (%p37) target = $region21
    $region20: #{tpu_custom_call.1} parent=1 // pred_region
      %40 = vst [vmem:[#allocation7] sm:$0xff] 0.0
      %41 = vst [vmem:[#allocation7 + $0x8] sm:$0xff] 0.0
      %42 = vst [vmem:[#allocation7 + $0x10] sm:$0xff] 0.0
      %43 = vst [vmem:[#allocation7 + $0x18] sm:$0xff] 0.0
    $region21: #{tpu_custom_call.1} parent=1 // pred_fallthru
      _
    %v44 = vld [vmem:[#allocation2] sm:$0xff]
    %v45 = vld [vmem:[#allocation2 + $0x8] sm:$0xff]
    %v46 = vld [vmem:[#allocation5] sm:$0xff]
    %v47 = vld [vmem:[#allocation5 + $0x8] sm:$0xff]
    %v48 = vand.u32 2147483647, %v44
    %v49 = vand.u32 2147483647, %v45
    %v50 = vsub.f32 0.0, %v48
    %v51 = vsub.f32 0.0, %v49
    %v52 = vmul.f32 %v50, 1.442695
    %v53 = vpow.pop %v52
    %v54 = vmul.f32 %v51, 1.442695
    %v55 = vpow.pop %v54
    %v56 = vadd.f32 %v53, 1.0
    %v57 = vadd.f32 %v55, 1.0
    %v58 = vrcp.pop %v56
    %v59 = vmul.f32 1.0, %v58
    %v60 = vrcp.pop %v57
    %v61 = vmul.f32 1.0, %v60
    %vm62 = vcmp.ge.f32.partialorder %v44, 0.0
    %vm63 = vcmp.ge.f32.partialorder %v45, 0.0
    %v64 = vmul.f32 %v53, %v59
    %v65 = vmul.f32 %v55, %v61
    %v66 = vsel %vm62, %v59, %v64
    %v67 = vsel %vm63, %v61, %v65
    %v68 = vmax.f32 %v44, 0.0
    %v69 = vmax.f32 %v45, 0.0
    %v70 = vmul.f32 %v44, %v46
    %v71 = vmul.f32 %v45, %v47
    %v72 = vsub.f32 %v68, %v70
    %v73 = vsub.f32 %v69, %v71
    %v74 = vadd.f32 %v53, 1.0
    %v75 = vlog2.pop %v74
    %v76 = vmul.f32 %v75, 0.6931472
    %v77 = vmul.f32 -0.5, %v53
    %v78 = vadd.f32 %v77, 1.0
    %v79 = vmul.f32 %v78, %v53
    %v80 = vand.u32 2147483647, %v53
    %vm81 = vcmp.lt.f32.partialorder %v80, 0.0004427343
    %v82 = vsel %vm81, %v79, %v76
    %v83 = vadd.f32 %v55, 1.0
    %v84 = vlog2.pop %v83
    %v85 = vmul.f32 %v84, 0.6931472
    %v86 = vmul.f32 -0.5, %v55
    %v87 = vadd.f32 %v86, 1.0
    %v88 = vmul.f32 %v87, %v55
    %v89 = vand.u32 2147483647, %v55
    %vm90 = vcmp.lt.f32.partialorder %v89, 0.0004427343
    %v91 = vsel %vm90, %v88, %v85
    %v92 = vadd.f32 %v72, %v82
    %v93 = vadd.f32 %v73, %v91
    %v94 = vld [vmem:[#allocation7] sm:$0xff]
    %v95 = vmul.f32 %v66, %v46
    %v96 = vmul.f32 %v67, %v47
    %v97 = vadd.f32 %v95, %v96
    %v98 = vadd.f32 %v94, %v97
    %99 = vst [vmem:[#allocation7] sm:$0xff] %v98
    %s100 = scalar_lea.vmem [#allocation7], 8
    %v101 = vld [vmem:[%s100] sm:$0xff]
    %v102 = vadd.f32 %v66, %v67
    %v103 = vadd.f32 %v101, %v102
    %104 = vst [vmem:[%s100] sm:$0xff] %v103
    %s105 = scalar_lea.vmem [#allocation7], 16
    %v106 = vld [vmem:[%s105] sm:$0xff]
    %v107 = vadd.f32 %v46, %v47
    %v108 = vadd.f32 %v106, %v107
    %109 = vst [vmem:[%s105] sm:$0xff] %v108
    %s110 = scalar_lea.vmem [#allocation7], 24
    %v111 = vld [vmem:[%s110] sm:$0xff]
    %v112 = vadd.f32 %v92, %v93
    %v113 = vadd.f32 %v111, %v112
    %114 = vst [vmem:[%s110] sm:$0xff] %v113
    // Predicated region
    $region22: #{tpu_custom_call.1} parent=1 // pred_check
      _
    $region23: #{tpu_custom_call.1} parent=1 // pred_check_branch
      %116 = sbr.rel (0) target = $region25
    $region24: #{tpu_custom_call.1} parent=1 // pred_region
      %s118 = ssub.s32 512, 512
      %119 = vsyncadd [#allocation4], %s118
      %s120 = sshll.u32 [#allocation7], 4
      %s121 = int_to_ptr.vmem [resolvable:$true] %s120
      %126 = dma.vmem_to_hbm [thread:$0]  %s121, 512, %s2, [#allocation4], 128, 128, 8
    $region25: #{tpu_custom_call.1} parent=1 // pred_fallthru
      _
    // Predicated region
    $region26: #{tpu_custom_call.1} parent=1 // pred_check
      _
    $region27: #{tpu_custom_call.1} parent=1 // pred_check_branch
      %128 = sbr.rel (0) target = $region29
    $region28: #{tpu_custom_call.1} parent=1 // pred_region
      %129 = dma.done [#allocation4], 512
    $region29: #{tpu_custom_call.1} parent=1 // pred_fallthru
      _
    %130 = vsyncpa [#allocation3], 1
    %131 = vsyncpa [#allocation6], 1
    %132 = vsyncpa [#allocation4], 1

</llo_original>
